<compile_context>
chip_gen: v7x
topology: tpu7x:2x2x1
jax: 0.10.0
libtpu: 0.0.40
codegen_flags: <defaults>
</compile_context>

<pallas_src>
import functools

import jax
import jax.numpy as jnp
from jax import lax
from jax.experimental import pallas as pl
from jax.experimental.pallas import tpu as pltpu

REVIN_EPS = 1e-5


def _round_up(a: int, b: int) -> int:
    return (a + b - 1) // b * b


def _vae_linear_kernel(x_ref, w_ref, b_ref, out_ref, kl_ref, *, d_model):
    """One row-tile of the fused RevIN + GaussianNet + (composed) decoder forward.

    x_ref   : (TN, L)      input rows (row = one (batch, channel) series)
    w_ref   : (L, F_pad)   fused weight  [W_mu^T | W_logvar^T | W_mu^T @ W_dec^T | 0]
    b_ref   : (1, F_pad)   fused bias    [b_mu   | b_logvar   | W_dec b_mu + b_dec | 0]
    out_ref : (TN, F_pad)  lane-dense denormed block; wrapper slices pred_len cols
    kl_ref  : (1, 1, 1)    per-block partial KL sum
    """
    x = x_ref[...].astype(jnp.float32)

    # ---- RevIN 'norm': per-row stats over the seq axis (biased var, eps in sqrt) ----
    mean = jnp.mean(x, axis=-1, keepdims=True)                     # (TN, 1)
    xc = x - mean
    var = jnp.mean(xc * xc, axis=-1, keepdims=True)                # unbiased=False
    inv_std = lax.rsqrt(var + REVIN_EPS)                           # EUP; no divide
    stdev = (var + REVIN_EPS) * inv_std                            # == sqrt(var+eps)
    xn = xc * inv_std                                              # (TN, L)

    # ---- One fused MXU matmul: [mu | logvar | decoder(mu)] columns at once ----
    fused = jnp.dot(xn.astype(w_ref.dtype), w_ref[...],
                    preferred_element_type=jnp.float32) + b_ref[...]

    mu = fused[:, :d_model]
    logvar = fused[:, d_model:2 * d_model]

    # Per-block partial KL (summed and /B in the wrapper) -> keeps the row axis
    # fully 'parallel' (v7x two-TensorCore sharding), no cross-block accumulator.
    kl = -0.5 * jnp.sum(1.0 + logvar - mu * mu - jnp.exp(logvar))
    kl_ref[...] = jnp.full((1, 1, 1), kl, dtype=jnp.float32)

    # ---- RevIN 'denorm' on the whole lane-dense block; single unmasked,
    # 128-lane-multiple store (mu/logvar/pad lanes are sliced off in the wrapper).
    out_ref[...] = (fused * stdev + mean).astype(out_ref.dtype)


@functools.partial(jax.jit, static_argnames=("row_tile", "use_bf16_matmul"))
def vae_linear_forward(x, w_mu, b_mu, w_lv, b_lv, w_dec, b_dec,
                       row_tile=None, use_bf16_matmul=False):
    """x: [B, L, C] float32.  Weights are nn.Linear-style (out_dim, in_dim)."""
    B, L, C = x.shape
    D = w_mu.shape[0]          # d_model
    P = w_dec.shape[0]         # pred_len
    N = B * C

    # ---- fold the two GaussianNet heads and the (z = mu) decoder into ONE weight ----
    wmu_t = w_mu.T.astype(jnp.float32)                     # (L, D)
    wlv_t = w_lv.T.astype(jnp.float32)                     # (L, D)
    wcomp = wmu_t @ w_dec.T.astype(jnp.float32)            # (L, P)  == W_mu^T W_dec^T
    bcomp = b_mu @ w_dec.T + b_dec                         # (P,)

    F = 2 * D + P
    F_pad = _round_up(F, 128)                              # lane-dense fused width
    w_fused = jnp.zeros((L, F_pad), jnp.float32)
    w_fused = w_fused.at[:, :D].set(wmu_t)
    w_fused = w_fused.at[:, D:2 * D].set(wlv_t)
    w_fused = w_fused.at[:, 2 * D:F].set(wcomp)
    b_fused = jnp.zeros((1, F_pad), jnp.float32)
    b_fused = b_fused.at[0, :D].set(b_mu)
    b_fused = b_fused.at[0, D:2 * D].set(b_lv)
    b_fused = b_fused.at[0, 2 * D:F].set(bcomp)
    if use_bf16_matmul:
        # v6e/v7x MXU bf16 path; accumulation stays f32 inside the kernel.
        w_fused = w_fused.astype(jnp.bfloat16)

    # glue: [B, L, C] -> transpose(1,2) -> [B, C, L] -> rows [N, L]
    # TODO(synk): these [B,L,C] <-> row-major glue transposes are still XLA ops;
    # with channel-minor input and small C they cannot be expressed as a
    # lane-dense Pallas block (lane dim would be C), so they stay in the wrapper.
    x_rows = jnp.transpose(x, (0, 2, 1)).reshape(N, L)

    # Row tile: biggest tile that comfortably fits VMEM with double buffering.
    # Per step ~ TN*(L + F_pad)*4 bytes per buffer; TN=512 stays well under the
    # v7x 64 MiB VMEM (32 MiB scoped default) even for L~512-class seq lengths;
    # v5e/v6e (128 MiB VMEM) can use row_tile=1024+.
    if row_tile is None:
        TN = min(512, _round_up(N, 8))
    else:
        TN = _round_up(int(row_tile), 8)
    N_pad = _round_up(N, TN)
    G = N_pad // TN
    if N_pad != N:
        x_rows = jnp.pad(x_rows, ((0, N_pad - N), (0, 0)))   # zero rows (corrected below)

    out_padded, kl_parts = pl.pallas_call(
        functools.partial(_vae_linear_kernel, d_model=D),
        grid=(G,),
        in_specs=[
            pl.BlockSpec((TN, L), lambda i: (i, 0)),          # x rows (pipelined)
            pl.BlockSpec((L, F_pad), lambda i: (0, 0)),       # fused weight (resident)
            pl.BlockSpec((1, F_pad), lambda i: (0, 0)),       # fused bias (resident)
        ],
        out_specs=(
            pl.BlockSpec((TN, F_pad), lambda i: (i, 0)),      # lane-dense output block
            pl.BlockSpec((1, 1, 1), lambda i: (i, 0, 0)),     # per-block KL partial
        ),
        out_shape=(
            jax.ShapeDtypeStruct((N_pad, F_pad), x.dtype),
            jax.ShapeDtypeStruct((G, 1, 1), jnp.float32),
        ),
        compiler_params=pltpu.CompilerParams(
            dimension_semantics=("parallel",)),
    )(x_rows, w_fused, b_fused)

    kl_sum = jnp.sum(kl_parts)
    n_pad_rows = N_pad - N
    if n_pad_rows > 0:
        # Zero-padded rows have xn == 0 exactly -> mu = b_mu, logvar = b_lv;
        # subtract their (exact) KL contribution.
        kl_pad_row = -0.5 * jnp.sum(1.0 + b_lv - b_mu * b_mu - jnp.exp(b_lv))
        kl_sum = kl_sum - n_pad_rows * kl_pad_row
    kl_loss = kl_sum / B

    # glue: keep only the decoder columns + real rows, back to [B, P, C]
    out_rows = out_padded[:N, 2 * D:2 * D + P]
    out = jnp.transpose(out_rows.reshape(B, C, P), (0, 2, 1))

    # TODO(synk): ssl reconstruction loss (ssl=False in this config) not implemented.
    return {'output': out, 'reconstruction_loss': None, 'kl_loss': kl_loss}


def _reference(x, w_mu, b_mu, w_lv, b_lv, w_dec, b_dec):
    """Pure-JAX reference of the PyTorch forward (eval mode)."""
    B = x.shape[0]
    mean = jnp.mean(x, axis=1, keepdims=True)                  # (B,1,C)
    var = jnp.mean((x - mean) ** 2, axis=1, keepdims=True)
    std = jnp.sqrt(var + REVIN_EPS)
    xn = (x - mean) / std
    xt = jnp.transpose(xn, (0, 2, 1))                          # (B,C,L)
    mu = xt @ w_mu.T + b_mu
    lv = xt @ w_lv.T + b_lv
    kl = -0.5 * jnp.sum(1.0 + lv - mu * mu - jnp.exp(lv)) / B
    y = jnp.transpose(mu @ w_dec.T + b_dec, (0, 2, 1))         # (B,P,C)
    return y * std + mean, kl


if __name__ == "__main__":
    # Config: enc_in=4 channels, seq_len=16, d_model=32, pred_len=8, batch=2,
    # revin=True, individual=True, affine=False, subtract_last=False, ssl=False.
    B, L, C, D, P = 2, 16, 4, 32, 8

    key = jax.random.PRNGKey(0)
    kx, k1, k2, k3, k4, k5, k6 = jax.random.split(key, 7)

    x = jax.random.normal(kx, (B, L, C), dtype=jnp.float32)

    # Deterministic nn.Linear-style params: weight (out, in), bias (out,)
    def linear_init(kw, out_dim, in_dim):
        bound = 1.0 / (in_dim ** 0.5)
        return jax.random.uniform(kw, (out_dim, in_dim), jnp.float32, -bound, bound)

    w_mu = linear_init(k1, D, L)
    b_mu = jax.random.uniform(k2, (D,), jnp.float32, -1.0 / (L ** 0.5), 1.0 / (L ** 0.5))
    w_lv = linear_init(k3, D, L)
    b_lv = jax.random.uniform(k4, (D,), jnp.float32, -1.0 / (L ** 0.5), 1.0 / (L ** 0.5))
    w_dec = linear_init(k5, P, D)
    b_dec = jax.random.uniform(k6, (P,), jnp.float32, -1.0 / (D ** 0.5), 1.0 / (D ** 0.5))

    result = vae_linear_forward(x, w_mu, b_mu, w_lv, b_lv, w_dec, b_dec)
    jax.block_until_ready(result['output'])
    jax.block_until_ready(result['kl_loss'])

    out_ref, kl_ref = _reference(x, w_mu, b_mu, w_lv, b_lv, w_dec, b_dec)

    assert result['output'].shape == (B, P, C)
    assert jnp.isfinite(result['output']).all()
    assert jnp.isfinite(result['kl_loss'])
    assert jnp.allclose(result['output'], out_ref, rtol=1e-3, atol=1e-3)
    assert jnp.allclose(result['kl_loss'], kl_ref, rtol=1e-3, atol=1e-3)
    print("KERNEL_OK")
</pallas_src>

<mosaic_0001>
module attributes {stable_mosaic.version = 11 : i64} {
  func.func @_vae_linear_kernel(%arg0: i32, %arg1: memref<8x16xf32, #tpu.memory_space<vmem>>, %arg2: memref<16x128xf32, #tpu.memory_space<vmem>>, %arg3: memref<1x128xf32, #tpu.memory_space<vmem>>, %arg4: memref<8x128xf32, #tpu.memory_space<vmem>>, %arg5: memref<1x1x1xf32, #tpu.memory_space<vmem>>) attributes {dimension_semantics = [#tpu.dimension_semantics<parallel>], iteration_bounds = array<i64: 1>, scalar_prefetch = 0 : i64, scratch_operands = 0 : i64, tpu.core_type = #tpu.core_type<tc>, window_params = [{transform_indices = @transform_0, window_bounds = array<i64: 8, 16>}, {pipeline_mode = #tpu.pipeline_mode<synchronous>, transform_indices = @transform_1, window_bounds = array<i64: 16, 128>}, {pipeline_mode = #tpu.pipeline_mode<synchronous>, transform_indices = @transform_2, window_bounds = array<i64: 1, 128>}, {transform_indices = @transform_3, window_bounds = array<i64: 8, 128>}, {transform_indices = @transform_4, window_bounds = array<i64: 1, 1, 1>}]} {
    %c0 = arith.constant 0 : index
    %c0_0 = arith.constant 0 : index
    %0 = vector.load %arg1[%c0, %c0_0] : memref<8x16xf32, #tpu.memory_space<vmem>>, vector<8x16xf32>
    %cst = arith.constant dense<0.000000e+00> : vector<8xf32>
    %1 = vector.multi_reduction <add>, %0, %cst [1] : vector<8x16xf32> to vector<8xf32>
    %2 = vector.shape_cast %1 : vector<8xf32> to vector<8x1xf32>
    %cst_1 = arith.constant 1.600000e+01 : f32
    %3 = vector.broadcast %cst_1 : f32 to vector<8x1xf32>
    %4 = arith.divf %2, %3 : vector<8x1xf32>
    %5 = vector.broadcast %4 : vector<8x1xf32> to vector<8x16xf32>
    %6 = arith.subf %0, %5 : vector<8x16xf32>
    %7 = arith.mulf %6, %6 : vector<8x16xf32>
    %cst_2 = arith.constant dense<0.000000e+00> : vector<8xf32>
    %8 = vector.multi_reduction <add>, %7, %cst_2 [1] : vector<8x16xf32> to vector<8xf32>
    %9 = vector.shape_cast %8 : vector<8xf32> to vector<8x1xf32>
    %cst_3 = arith.constant 1.600000e+01 : f32
    %10 = vector.broadcast %cst_3 : f32 to vector<8x1xf32>
    %11 = arith.divf %9, %10 : vector<8x1xf32>
    %cst_4 = arith.constant 9.99999974E-6 : f32
    %12 = vector.broadcast %cst_4 : f32 to vector<8x1xf32>
    %13 = arith.addf %11, %12 : vector<8x1xf32>
    %14 = math.rsqrt %13 : vector<8x1xf32>
    %cst_5 = arith.constant 9.99999974E-6 : f32
    %15 = vector.broadcast %cst_5 : f32 to vector<8x1xf32>
    %16 = arith.addf %11, %15 : vector<8x1xf32>
    %17 = arith.mulf %16, %14 : vector<8x1xf32>
    %18 = vector.broadcast %14 : vector<8x1xf32> to vector<8x16xf32>
    %19 = arith.mulf %6, %18 : vector<8x16xf32>
    %c0_6 = arith.constant 0 : index
    %c0_7 = arith.constant 0 : index
    %20 = vector.load %arg2[%c0_6, %c0_7] : memref<16x128xf32, #tpu.memory_space<vmem>>, vector<16x128xf32>
    %cst_8 = arith.constant dense<0.000000e+00> : vector<8x128xf32>
    %21 = tpu.matmul %19, %20, %cst_8 {dimension_numbers = #tpu.dot_dimension_numbers<[1], [0], [0], [1], [0, 0, 1, 1], [], []>} : vector<8x16xf32>, vector<16x128xf32>, vector<8x128xf32> -> vector<8x128xf32>
    %c0_9 = arith.constant 0 : index
    %c0_10 = arith.constant 0 : index
    %22 = vector.load %arg3[%c0_9, %c0_10] : memref<1x128xf32, #tpu.memory_space<vmem>>, vector<1x128xf32>
    %23 = vector.broadcast %22 : vector<1x128xf32> to vector<8x128xf32>
    %24 = arith.addf %21, %23 : vector<8x128xf32>
    %25 = vector.extract_strided_slice %24 {offsets = [0, 0], sizes = [8, 32], strides = [1, 1]} : vector<8x128xf32> to vector<8x32xf32>
    %26 = vector.extract_strided_slice %24 {offsets = [0, 32], sizes = [8, 32], strides = [1, 1]} : vector<8x128xf32> to vector<8x32xf32>
    %cst_11 = arith.constant 1.000000e+00 : f32
    %27 = vector.broadcast %cst_11 : f32 to vector<8x32xf32>
    %28 = arith.addf %27, %26 : vector<8x32xf32>
    %29 = arith.mulf %25, %25 : vector<8x32xf32>
    %30 = arith.subf %28, %29 : vector<8x32xf32>
    %31 = math.exp %26 : vector<8x32xf32>
    %32 = arith.subf %30, %31 : vector<8x32xf32>
    %33 = vector.shape_cast %32 : vector<8x32xf32> to vector<1x8x32xf32>
    %cst_12 = arith.constant dense<0.000000e+00> : vector<1xf32>
    %34 = vector.multi_reduction <add>, %33, %cst_12 [1, 2] : vector<1x8x32xf32> to vector<1xf32>
    %35 = vector.shape_cast %34 : vector<1xf32> to vector<1x1x1xf32>
    %36 = vector.extract %35[0, 0, 0] : f32 from vector<1x1x1xf32>
    %cst_13 = arith.constant -5.000000e-01 : f32
    %37 = arith.mulf %cst_13, %36 : f32
    %38 = vector.broadcast %37 : f32 to vector<1x1x1xf32>
    %c0_14 = arith.constant 0 : index
    %c0_15 = arith.constant 0 : index
    %c0_16 = arith.constant 0 : index
    %39 = vector.load %arg5[%c0_14, %c0_15, %c0_16] : memref<1x1x1xf32, #tpu.memory_space<vmem>>, vector<1x1x1xf32>
    tpu.vector_store %arg5[%c0_14, %c0_15, %c0_16], %38 {strides = array<i32>} : memref<1x1x1xf32, #tpu.memory_space<vmem>>, vector<1x1x1xf32>,
    %40 = vector.broadcast %17 : vector<8x1xf32> to vector<8x128xf32>
    %41 = arith.mulf %24, %40 : vector<8x128xf32>
    %42 = vector.broadcast %4 : vector<8x1xf32> to vector<8x128xf32>
    %43 = arith.addf %41, %42 : vector<8x128xf32>
    %c0_17 = arith.constant 0 : index
    %c0_18 = arith.constant 0 : index
    %44 = vector.load %arg4[%c0_17, %c0_18] : memref<8x128xf32, #tpu.memory_space<vmem>>, vector<8x128xf32>
    tpu.vector_store %arg4[%c0_17, %c0_18], %43 {strides = array<i32>} : memref<8x128xf32, #tpu.memory_space<vmem>>, vector<8x128xf32>,
    return
  }
  func.func @transform_0(%arg0: i32) -> (i32, i32) {
    %c0_i32 = arith.constant 0 : i32
    %c0_i32_0 = arith.constant 0 : i32
    return %arg0, %c0_i32 : i32, i32
  }
  func.func @transform_1(%arg0: i32) -> (i32, i32) {
    %c0_i32 = arith.constant 0 : i32
    %c0_i32_0 = arith.constant 0 : i32
    %c0_i32_1 = arith.constant 0 : i32
    return %c0_i32, %c0_i32_0 : i32, i32
  }
  func.func @transform_2(%arg0: i32) -> (i32, i32) {
    %c0_i32 = arith.constant 0 : i32
    %c0_i32_0 = arith.constant 0 : i32
    %c0_i32_1 = arith.constant 0 : i32
    return %c0_i32, %c0_i32_0 : i32, i32
  }
  func.func @transform_3(%arg0: i32) -> (i32, i32) {
    %c0_i32 = arith.constant 0 : i32
    %c0_i32_0 = arith.constant 0 : i32
    return %arg0, %c0_i32 : i32, i32
  }
  func.func @transform_4(%arg0: i32) -> (i32, i32, i32) {
    %c0_i32 = arith.constant 0 : i32
    %c0_i32_0 = arith.constant 0 : i32
    %c0_i32_1 = arith.constant 0 : i32
    return %arg0, %c0_i32, %c0_i32_0 : i32, i32, i32
  }
}

</mosaic_0001>

<llo_original>
// kernel: vae_linear_forward.1
$region0: #{vae_linear_forward.1}
  #allocation0 [shape = 'u32[]', space=smem, size = 0x4, offset = 0x4, fixed_abs, tag = 'smem constant byte address 0x4 - core index']
  #allocation1 [shape = 'u32[144,128]{1,0:T(1,128)}', space=vmem, size = 0x12000, scoped, tag = 'internal scratch']
  %s0 = inlined_call_operand.vmem [shape: f32[8,16], index: 0, kind: input, shape index: {}]
  %s1 = inlined_call_operand.vmem [shape: f32[16,128], index: 1, kind: input, shape index: {}]
  %s2 = inlined_call_operand.vmem [shape: f32[1,128], index: 2, kind: input, shape index: {}]
  %s3 = inlined_call_operand.vmem [shape: f32[8,128], index: 3, kind: output, shape index: {0}]
  %s4 = inlined_call_operand.hbm [shape: f32[1,1,1], index: 4, kind: output, shape index: {1}]
  %5 = xla_tuple %s3, %s4
  %s6 = sld [smem:[#allocation0]]
  $region30: #{vae_linear_forward.1} parent=0
    _
  %s8 = ssub.s32 1, %s6
  %s9 = scalar_select 0, %s8, %s6
  $region1: #{vae_linear_forward.1} parent=0
    #allocation2 [shape = 'u8[512]{0}', space=vmem, size = 0x400, scoped, tag = 'output window, operand 1, single buffered']
    #allocation3 [shape = 's32[1]{0}', space=sflag, size = 0x4, scoped, tag = 'scoped memory for vae_linear_forward.1']
    %10 = vsyncpa [#allocation3], 0
    // Predicated region
    $region2: #{vae_linear_forward.1} parent=1 // pred_check
      _
    $region3: #{vae_linear_forward.1} parent=1 // pred_check_branch
      %12 = sbr.rel (0) target = $region5
    $region4: #{vae_linear_forward.1} parent=1 // pred_region
      _
    $region5: #{vae_linear_forward.1} parent=1 // pred_fallthru
      _
    // Predicated region
    $region6: #{vae_linear_forward.1} parent=1 // pred_check
      _
    $region7: #{vae_linear_forward.1} parent=1 // pred_check_branch
      %14 = sbr.rel (0) target = $region9
    $region8: #{vae_linear_forward.1} parent=1 // pred_region
      _
    $region9: #{vae_linear_forward.1} parent=1 // pred_fallthru
      _
    // Predicated region
    $region10: #{vae_linear_forward.1} parent=1 // pred_check
      _
    $region11: #{vae_linear_forward.1} parent=1 // pred_check_branch
      %16 = sbr.rel (0) target = $region13
    $region12: #{vae_linear_forward.1} parent=1 // pred_region
      _
    $region13: #{vae_linear_forward.1} parent=1 // pred_fallthru
      _
    %v17 = vld [vmem:[%s0] sm:$0xff]
    %vm18 = vcmask 130048
    %v19 = vsel %vm18, %v17, 0.0
    %20 = vadd.xlane.f32.xlu0 %v19
    %v21 = vpop.xlane.xlu0 %20
    %v22 = vrcp.pop 16.0
    %v23 = vmul.f32 %v21, %v22
    %v24 = vsub.f32 %v17, %v23
    %v25 = vmul.f32 %v24, %v24
    %v26 = vsel %vm18, %v25, 0.0
    %27 = vadd.xlane.f32.xlu0 %v26
    %v28 = vpop.xlane.xlu0 %27
    %v29 = vmul.f32 %v28, %v22
    %v30 = vadd.f32 %v29, 1e-05
    %v31 = vrsqrt.pop %v30
    %v32 = vmul.f32 %v30, %v31
    %v33 = vmul.f32 %v24, %v31
    %v34 = vld [vmem:[%s1] sm:$0xff]
    %v35 = vld [vmem:[%s1 + $0x8] sm:$0xff]
    %v36 = vld [vmem:[%s2] sm:$0x1]
    %v38 = vlaneseq
    %v39 = vshrl.u32 %v38, 7
    %v40 = vsub.s32 0, %v39
    %v41 = vrot.slane %v36, %v40
    %v44 = vsel %vm18, %v33, 0
    %46 = vmatprep.subr.mxu0 0.0
    %47 = vmatpush1.msra.mxu0 %v34
    %48 = vmatprep.subr.mxu0 0.0
    %49 = vmatpush1.msra.mxu0 %v35
    %50 = vmatprep.subr.mxu0 0.0
    %51 = vmatpush1.msra.mxu0 0.0
    %52 = vmatprep.subr.mxu0 0.0
    %53 = vmatpush1.msra.mxu0 0.0
    %54 = vmatprep.subr.mxu0 0.0
    %55 = vmatpush1.msra.mxu0 0.0
    %56 = vmatprep.subr.mxu0 0.0
    %57 = vmatpush1.msra.mxu0 0.0
    %58 = vmatprep.subr.mxu0 0.0
    %59 = vmatpush1.msra.mxu0 0.0
    %60 = vmatprep.subr.mxu0 0.0
    %61 = vmatpush1.msra.mxu0 0.0
    %62 = vmatprep.subr.mxu0 0.0
    %63 = vmatpush1.msra.mxu0 0.0
    %64 = vmatprep.subr.mxu0 0.0
    %65 = vmatpush1.msra.mxu0 0.0
    %66 = vmatprep.subr.mxu0 0.0
    %67 = vmatpush1.msra.mxu0 0.0
    %68 = vmatprep.subr.mxu0 0.0
    %69 = vmatpush1.msra.mxu0 0.0
    %70 = vmatprep.subr.mxu0 0.0
    %71 = vmatpush1.msra.mxu0 0.0
    %72 = vmatprep.subr.mxu0 0.0
    %73 = vmatpush1.msra.mxu0 0.0
    %74 = vmatprep.subr.mxu0 0.0
    %75 = vmatpush1.msra.mxu0 0.0
    %76 = vmatprep.subr.mxu0 0.0
    %77 = vmatpush1.msra.mxu0 0.0
    %78 = vmatprep.subr.mxu0 0.0
    %79 = vmatpush1.msra.mxu0 0.0
    %80 = vmatprep.subr.mxu0 0.0
    %81 = vmatpush1.msra.mxu0 0.0
    %82 = vmatprep.subr.mxu0 0.0
    %83 = vmatpush1.msra.mxu0 0.0
    %84 = vmatprep.subr.mxu0 0.0
    %85 = vmatpush1.msra.mxu0 0.0
    %86 = vmatprep.subr.mxu0 0.0
    %87 = vmatpush1.msra.mxu0 0.0
    %88 = vmatprep.subr.mxu0 0.0
    %89 = vmatpush1.msra.mxu0 0.0
    %90 = vmatprep.subr.mxu0 0.0
    %91 = vmatpush1.msra.mxu0 0.0
    %92 = vmatprep.subr.mxu0 0.0
    %93 = vmatpush1.msra.mxu0 0.0
    %94 = vmatprep.subr.mxu0 0.0
    %95 = vmatpush1.msra.mxu0 0.0
    %96 = vmatprep.subr.mxu0 0.0
    %97 = vmatpush1.msra.mxu0 0.0
    %98 = vmatprep.subr.mxu0 0.0
    %99 = vmatpush1.msra.mxu0 0.0
    %100 = vmatprep.subr.mxu0 0.0
    %101 = vmatpush1.msra.mxu0 0.0
    %102 = vmatprep.subr.mxu0 0.0
    %103 = vmatpush1.msra.mxu0 0.0
    %104 = vmatprep.subr.mxu0 0.0
    %105 = vmatpush1.msra.mxu0 0.0
    %106 = vmatprep.subr.mxu0 0.0
    %107 = vmatpush1.msra.mxu0 0.0
    %108 = vmatprep.subr.mxu0 0.0
    %109 = vmatpush1.msra.mxu0 0.0
    %110 = vmatprep.mubr.f32.mxu0 0.0
    %111 = vmatmul.mubr.f32.gmra.mrb[0].mxu0 %v44
    %v112 = vpop.f32.mrb[0].mxu0
    %v113 = vadd.f32 %v41, %v112
    %v114 = vpop.f32.mrb[0].mxu0
    %115 = vdwg.mxu0
    %v116 = vadd.f32 %v113, 1.0
    %v117 = vmul.f32 %v113, %v113
    %119 = vrot.lane.b32.xlu0 %v117, 32
    %v120 = vpop.permute.xlu0 %119
    %v122 = vsub.f32 %v116, %v120
    %v123 = vmul.f32 %v113, 1.442695
    %v124 = vpow.pop %v123
    %v125 = vsub.f32 %v122, %v124
    %127 = vrot.lane.b32.xlu0 %v125, 96
    %v128 = vpop.permute.xlu0 %127
    %vm130 = vcmask 261120
    %v131 = vsel %vm130, %v128, 0.0
    %132 = vadd.xlane.f32.xlu0 %v131
    %v133 = vpop.xlane.xlu0 %132
    %v134 = vrot.slane %v133, 4
    %v135 = vadd.f32 %v133, %v134
    %v136 = vrot.slane %v135, 2
    %v137 = vadd.f32 %v135, %v136
    %v138 = vrot.slane %v137, 1
    %v139 = vadd.f32 %v137, %v138
    %s140 = vtos %v139
    %s141 = smul.f32 %s140, -0.5
    %v142 = vstv %s141
    %vm143 = vcmask 0
    %144 = vst.msk [vmem:[#allocation2] sm:$0x1] %vm143, %v142
    %v145 = vmul.f32 %v113, %v32
    %v146 = vadd.f32 %v145, %v23
    %147 = vst [vmem:[%s3] sm:$0xff] %v146
    // Predicated region
    $region14: #{vae_linear_forward.1} parent=1 // pred_check
      _
    $region15: #{vae_linear_forward.1} parent=1 // pred_check_branch
      %149 = sbr.rel (0) target = $region17
    $region16: #{vae_linear_forward.1} parent=1 // pred_region
      _
    $region17: #{vae_linear_forward.1} parent=1 // pred_fallthru
      _
    // Predicated region
    $region18: #{vae_linear_forward.1} parent=1 // pred_check
      _
    $region19: #{vae_linear_forward.1} parent=1 // pred_check_branch
      %151 = sbr.rel (0) target = $region21
    $region20: #{vae_linear_forward.1} parent=1 // pred_region
      %s153 = ssub.s32 16, 16
      %154 = vsyncadd [#allocation3], %s153
      %s156 = sshll.u32 [#allocation2], 4
      %s157 = int_to_ptr.vmem [resolvable:$true] %s156
      %159 = dma.vmem_to_hbm [thread:$0]  %s157, 16, %s4, [#allocation3]
    $region21: #{vae_linear_forward.1} parent=1 // pred_fallthru
      _
    // Predicated region
    $region22: #{vae_linear_forward.1} parent=1 // pred_check
      _
    $region23: #{vae_linear_forward.1} parent=1 // pred_check_branch
      %161 = sbr.rel (0) target = $region25
    $region24: #{vae_linear_forward.1} parent=1 // pred_region
      _
    $region25: #{vae_linear_forward.1} parent=1 // pred_fallthru
      _
    // Predicated region
    $region26: #{vae_linear_forward.1} parent=1 // pred_check
      _
    $region27: #{vae_linear_forward.1} parent=1 // pred_check_branch
      %163 = sbr.rel (0) target = $region29
    $region28: #{vae_linear_forward.1} parent=1 // pred_region
      %164 = dma.done [#allocation3], 16
    $region29: #{vae_linear_forward.1} parent=1 // pred_fallthru
      _
    %165 = vsyncpa [#allocation3], 1

</llo_original>
